<compile_context>
chip_gen: v5e
topology: v5e:2x2
jax: 0.10.0
libtpu: 0.0.40
codegen_flags: <defaults>
</compile_context>

<pallas_src>
import jax
import jax.numpy as jnp
from jax.experimental import pallas as pl
from jax.experimental.pallas import tpu as pltpu


# ----------------------------------------------------------------------------
# Kernels
# ----------------------------------------------------------------------------
def _vpu_mix_kernel(x_ref, w_ref, b_ref, o_ref):
    """Tiny-C channel mix on the VPU.

    x_ref: (C_in, rows_tile, 128)  dense per-channel spatial blocks (VMEM)
    w_ref: (C_out, C_in)           pre-summed branch weights (SMEM, f32)
    b_ref: (C_out,)                pre-summed branch bias   (SMEM, f32)
    o_ref: (C_out, rows_tile, 128)
    """
    c_in = x_ref.shape[0]
    c_out = o_ref.shape[0]
    x = x_ref[...].astype(jnp.float32)          # cast hoisted out of the unroll
    for o in range(c_out):                      # static unroll, c_out <= 8
        acc = x[0] * w_ref[o, 0]                # SMEM scalar * dense block
        for ci in range(1, c_in):               # static unroll, c_in <= 8
            acc = acc + x[ci] * w_ref[o, ci]
        o_ref[o] = (acc + b_ref[o]).astype(o_ref.dtype)


def _mxu_mix_kernel(x_ref, w_ref, b_ref, o_ref):
    """General channel mix: one MXU matmul with f32 accumulation.

    x_ref: (C_in, T)      spatial tile, channels on sublanes, spatial on lanes
    w_ref: (C_out, C_in)  pre-summed branch weights (VMEM, resident)
    b_ref: (C_out, 1)     pre-summed branch bias (VMEM, f32, resident)
    o_ref: (C_out, T)
    """
    acc = jnp.dot(w_ref[...], x_ref[...], preferred_element_type=jnp.float32)
    o_ref[...] = (acc + b_ref[...]).astype(o_ref.dtype)


# ----------------------------------------------------------------------------
# Host-side helpers
# ----------------------------------------------------------------------------
def _round_up(v, m):
    return ((v + m - 1) // m) * m


def _vmem_capacity_bytes():
    """Physical VMEM per TensorCore; conservative (v7x-sized) fallback."""
    try:
        return int(pltpu.get_tpu_info().vmem_capacity_bytes)
    except Exception:
        return 64 * 1024 * 1024


def _keep_two_grid_steps(n_batch, extent, tile, unit):
    """Shrink the tile so n_batch * num_tiles >= 2 (v7x has 2 TensorCores)."""
    num = -(-extent // tile)
    while n_batch * num < 2 and tile > unit:
        tile = max(unit, ((tile // 2) // unit) * unit)
        num = -(-extent // tile)
    return tile


# ----------------------------------------------------------------------------
# Wrapper
# ----------------------------------------------------------------------------
def concat_add_table(x_nchw, weights, biases):
    """y = sum_b conv1x1(x; weights[b], biases[b]), matching ConcatAddTable.

    x_nchw : (N, C, H, W)
    weights: (NB, C_out, C_in)   -- 1x1 conv kernels squeezed
    biases : (NB, C_out)
    returns: (N, C_out, H, W)
    """
    N, C, H, W = x_nchw.shape
    NB, C_out, C_in = weights.shape
    assert C_in == C

    # Linearity collapse; sum branch params in float32 (precision-safe).
    w_sum32 = weights.astype(jnp.float32).sum(axis=0)   # (C_out, C_in)
    b_sum32 = biases.astype(jnp.float32).sum(axis=0)    # (C_out,)

    hw = H * W
    itemsize = jnp.dtype(x_nchw.dtype).itemsize

    # ---- per-generation VMEM budget -> spatial tile (in lanes) -------------
    vmem_cap = _vmem_capacity_bytes()
    if vmem_cap <= 64 * 1024 * 1024:          # v7x-class: 64 MiB per TC
        target_block_bytes = 6 * 1024 * 1024  # in+out bytes per grid step
        vmem_limit = 28 * 1024 * 1024
    else:                                      # v5e / v6e: 128 MiB per TC
        target_block_bytes = 12 * 1024 * 1024
        vmem_limit = 48 * 1024 * 1024
    per_lane_bytes = (C_in + C_out) * itemsize
    tile_lanes = max(128, (target_block_bytes // per_lane_bytes) // 128 * 128)
    tile_lanes = min(tile_lanes, _round_up(hw, 128))

    cost = pl.CostEstimate(
        flops=2 * N * hw * C_in * C_out,
        transcendentals=0,
        bytes_accessed=(N * C_in * hw + N * C_out * hw) * itemsize
        + (C_out * C_in + C_out) * 4,
    )
    cparams = pltpu.CompilerParams(
        dimension_semantics=("parallel", "parallel"),
        vmem_limit_bytes=vmem_limit,
    )

    use_dense_vpu = (max(C_in, C_out) <= 8) and (hw % 128 == 0)

    if use_dense_vpu:
        # ---- tiny-C path: dense (rows, 128) per-channel blocks + SMEM scalars
        rows = hw // 128
        x4 = x_nchw.reshape(N, C_in, rows, 128)          # free row-major view
        rows_tile = min(tile_lanes // 128, rows)
        if rows_tile < rows:                              # (8,128) legality
            rows_tile = min(rows, max(8, (rows_tile // 8) * 8))
        rows_tile = _keep_two_grid_steps(N, rows, rows_tile, unit=8)
        grid = (N, pl.cdiv(rows, rows_tile))

        out4 = pl.pallas_call(
            _vpu_mix_kernel,
            out_shape=jax.ShapeDtypeStruct((N, C_out, rows, 128), x_nchw.dtype),
            grid_spec=pltpu.PrefetchScalarGridSpec(
                num_scalar_prefetch=0,
                grid=grid,
                in_specs=[
                    pl.BlockSpec((None, C_in, rows_tile, 128),
                                 lambda n, r: (n, 0, r, 0)),
                    pl.BlockSpec(memory_space=pltpu.MemorySpace.SMEM),  # w_sum
                    pl.BlockSpec(memory_space=pltpu.MemorySpace.SMEM),  # b_sum
                ],
                out_specs=pl.BlockSpec((None, C_out, rows_tile, 128),
                                       lambda n, r: (n, 0, r, 0)),
            ),
            compiler_params=cparams,
            cost_estimate=cost,
        )(x4, w_sum32, b_sum32)
        return out4.reshape(N, C_out, H, W)

    # ---- general path: NCHW view (N, C, H*W); ragged tail via cdiv grid ----
    x_flat = x_nchw.reshape(N, C_in, hw)                  # free view
    tile_lanes = _keep_two_grid_steps(N, hw, tile_lanes, unit=128)
    grid = (N, pl.cdiv(hw, tile_lanes))                   # ragged last block OK

    out_flat = pl.pallas_call(
        _mxu_mix_kernel,
        out_shape=jax.ShapeDtypeStruct((N, C_out, hw), x_nchw.dtype),
        grid_spec=pltpu.PrefetchScalarGridSpec(
            num_scalar_prefetch=0,
            grid=grid,
            in_specs=[
                pl.BlockSpec((None, C_in, tile_lanes), lambda n, j: (n, 0, j)),
                pl.BlockSpec((C_out, C_in), lambda n, j: (0, 0)),   # resident
                pl.BlockSpec((C_out, 1), lambda n, j: (0, 0)),      # resident
            ],
            out_specs=pl.BlockSpec((None, C_out, tile_lanes),
                                   lambda n, j: (n, 0, j)),
        ),
        compiler_params=cparams,
        cost_estimate=cost,
    )(x_flat, w_sum32.astype(x_nchw.dtype), b_sum32.reshape(C_out, 1))
    return out_flat.reshape(N, C_out, H, W)


# ----------------------------------------------------------------------------
# Self-test
# ----------------------------------------------------------------------------
if __name__ == "__main__":
    key = jax.random.PRNGKey(0)
    k_x, k_w, k_b = jax.random.split(key, 3)

    N, C, H, W = 2, 4, 16, 16
    NB = 3  # number of branches in the ConcatAddTable

    x = jax.random.normal(k_x, (N, C, H, W), dtype=jnp.float32)
    # Deterministic synthetic params for NB branches of Conv2d(C, C, kernel=1).
    weights = 0.1 * jax.random.normal(k_w, (NB, C, C), dtype=jnp.float32)
    biases = 0.1 * jax.random.normal(k_b, (NB, C), dtype=jnp.float32)

    y = concat_add_table(x, weights, biases)
    y = jax.block_until_ready(y)

    # Pure-JAX reference matching the original module: per-branch conv, summed.
    x_flat = x.reshape(N, C, H * W)
    ref = None
    for bi in range(NB):
        yb = jnp.einsum("oc,ncp->nop", weights[bi], x_flat) + biases[bi][None, :, None]
        ref = yb if ref is None else ref + yb
    ref = ref.reshape(N, C, H, W)

    assert y.shape == (N, C, H, W)
    assert jnp.allclose(y, ref, atol=1e-5, rtol=1e-5)
    print("KERNEL_OK")
</pallas_src>

<mosaic_0001>
module attributes {stable_mosaic.version = 11 : i64} {
  func.func @_vpu_mix_kernel(%arg0: i32, %arg1: i32, %arg2: memref<1x4x2x128xf32, #tpu.memory_space<vmem>>, %arg3: memref<4x4xf32, #tpu.memory_space<smem>>, %arg4: memref<4xf32, #tpu.memory_space<smem>>, %arg5: memref<1x4x2x128xf32, #tpu.memory_space<vmem>>) attributes {dimension_semantics = [#tpu.dimension_semantics<parallel>, #tpu.dimension_semantics<parallel>], iteration_bounds = array<i64: 2, 1>, scalar_prefetch = 0 : i64, scratch_operands = 0 : i64, tpu.core_type = #tpu.core_type<tc>, window_params = [{transform_indices = @transform_0, window_bounds = array<i64: 1, 4, 2, 128>}, {transform_indices = @transform_1, window_bounds = array<i64: 4, 4>}, {transform_indices = @transform_2, window_bounds = array<i64: 4>}, {transform_indices = @transform_3, window_bounds = array<i64: 1, 4, 2, 128>}]} {
    %c0 = arith.constant 0 : index
    %c0_0 = arith.constant 0 : index
    %c0_1 = arith.constant 0 : index
    %c0_2 = arith.constant 0 : index
    %0 = vector.load %arg2[%c0, %c0_0, %c0_1, %c0_2] : memref<1x4x2x128xf32, #tpu.memory_space<vmem>>, vector<1x4x2x128xf32>
    %1 = vector.shape_cast %0 : vector<1x4x2x128xf32> to vector<4x2x128xf32>
    %2 = vector.extract_strided_slice %1 {offsets = [0, 0, 0], sizes = [1, 2, 128], strides = [1, 1, 1]} : vector<4x2x128xf32> to vector<1x2x128xf32>
    %3 = vector.shape_cast %2 : vector<1x2x128xf32> to vector<2x128xf32>
    %c0_3 = arith.constant 0 : index
    %c0_4 = arith.constant 0 : index
    %4 = memref.load %arg3[%c0_3, %c0_4] : memref<4x4xf32, #tpu.memory_space<smem>>
    %5 = vector.broadcast %4 : f32 to vector<2x128xf32>
    %6 = arith.mulf %3, %5 : vector<2x128xf32>
    %7 = vector.extract_strided_slice %1 {offsets = [1, 0, 0], sizes = [1, 2, 128], strides = [1, 1, 1]} : vector<4x2x128xf32> to vector<1x2x128xf32>
    %8 = vector.shape_cast %7 : vector<1x2x128xf32> to vector<2x128xf32>
    %c0_5 = arith.constant 0 : index
    %c1 = arith.constant 1 : index
    %9 = memref.load %arg3[%c0_5, %c1] : memref<4x4xf32, #tpu.memory_space<smem>>
    %10 = vector.broadcast %9 : f32 to vector<2x128xf32>
    %11 = arith.mulf %8, %10 : vector<2x128xf32>
    %12 = arith.addf %6, %11 : vector<2x128xf32>
    %13 = vector.extract_strided_slice %1 {offsets = [2, 0, 0], sizes = [1, 2, 128], strides = [1, 1, 1]} : vector<4x2x128xf32> to vector<1x2x128xf32>
    %14 = vector.shape_cast %13 : vector<1x2x128xf32> to vector<2x128xf32>
    %c0_6 = arith.constant 0 : index
    %c2 = arith.constant 2 : index
    %15 = memref.load %arg3[%c0_6, %c2] : memref<4x4xf32, #tpu.memory_space<smem>>
    %16 = vector.broadcast %15 : f32 to vector<2x128xf32>
    %17 = arith.mulf %14, %16 : vector<2x128xf32>
    %18 = arith.addf %12, %17 : vector<2x128xf32>
    %19 = vector.extract_strided_slice %1 {offsets = [3, 0, 0], sizes = [1, 2, 128], strides = [1, 1, 1]} : vector<4x2x128xf32> to vector<1x2x128xf32>
    %20 = vector.shape_cast %19 : vector<1x2x128xf32> to vector<2x128xf32>
    %c0_7 = arith.constant 0 : index
    %c3 = arith.constant 3 : index
    %21 = memref.load %arg3[%c0_7, %c3] : memref<4x4xf32, #tpu.memory_space<smem>>
    %22 = vector.broadcast %21 : f32 to vector<2x128xf32>
    %23 = arith.mulf %20, %22 : vector<2x128xf32>
    %24 = arith.addf %18, %23 : vector<2x128xf32>
    %c0_8 = arith.constant 0 : index
    %25 = memref.load %arg4[%c0_8] : memref<4xf32, #tpu.memory_space<smem>>
    %26 = vector.broadcast %25 : f32 to vector<2x128xf32>
    %27 = arith.addf %24, %26 : vector<2x128xf32>
    %c0_9 = arith.constant 0 : index
    %c0_10 = arith.constant 0 : index
    %c0_11 = arith.constant 0 : index
    %c0_12 = arith.constant 0 : index
    %28 = vector.load %arg5[%c0_9, %c0_10, %c0_11, %c0_12] : memref<1x4x2x128xf32, #tpu.memory_space<vmem>>, vector<1x1x2x128xf32>
    %29 = vector.shape_cast %28 : vector<1x1x2x128xf32> to vector<2x128xf32>
    %30 = vector.shape_cast %27 : vector<2x128xf32> to vector<1x1x2x128xf32>
    tpu.vector_store %arg5[%c0_9, %c0_10, %c0_11, %c0_12], %30 {strides = array<i32>} : memref<1x4x2x128xf32, #tpu.memory_space<vmem>>, vector<1x1x2x128xf32>,
    %31 = vector.extract_strided_slice %1 {offsets = [0, 0, 0], sizes = [1, 2, 128], strides = [1, 1, 1]} : vector<4x2x128xf32> to vector<1x2x128xf32>
    %32 = vector.shape_cast %31 : vector<1x2x128xf32> to vector<2x128xf32>
    %c1_13 = arith.constant 1 : index
    %c0_14 = arith.constant 0 : index
    %33 = memref.load %arg3[%c1_13, %c0_14] : memref<4x4xf32, #tpu.memory_space<smem>>
    %34 = vector.broadcast %33 : f32 to vector<2x128xf32>
    %35 = arith.mulf %32, %34 : vector<2x128xf32>
    %36 = vector.extract_strided_slice %1 {offsets = [1, 0, 0], sizes = [1, 2, 128], strides = [1, 1, 1]} : vector<4x2x128xf32> to vector<1x2x128xf32>
    %37 = vector.shape_cast %36 : vector<1x2x128xf32> to vector<2x128xf32>
    %c1_15 = arith.constant 1 : index
    %c1_16 = arith.constant 1 : index
    %38 = memref.load %arg3[%c1_15, %c1_16] : memref<4x4xf32, #tpu.memory_space<smem>>
    %39 = vector.broadcast %38 : f32 to vector<2x128xf32>
    %40 = arith.mulf %37, %39 : vector<2x128xf32>
    %41 = arith.addf %35, %40 : vector<2x128xf32>
    %42 = vector.extract_strided_slice %1 {offsets = [2, 0, 0], sizes = [1, 2, 128], strides = [1, 1, 1]} : vector<4x2x128xf32> to vector<1x2x128xf32>
    %43 = vector.shape_cast %42 : vector<1x2x128xf32> to vector<2x128xf32>
    %c1_17 = arith.constant 1 : index
    %c2_18 = arith.constant 2 : index
    %44 = memref.load %arg3[%c1_17, %c2_18] : memref<4x4xf32, #tpu.memory_space<smem>>
    %45 = vector.broadcast %44 : f32 to vector<2x128xf32>
    %46 = arith.mulf %43, %45 : vector<2x128xf32>
    %47 = arith.addf %41, %46 : vector<2x128xf32>
    %48 = vector.extract_strided_slice %1 {offsets = [3, 0, 0], sizes = [1, 2, 128], strides = [1, 1, 1]} : vector<4x2x128xf32> to vector<1x2x128xf32>
    %49 = vector.shape_cast %48 : vector<1x2x128xf32> to vector<2x128xf32>
    %c1_19 = arith.constant 1 : index
    %c3_20 = arith.constant 3 : index
    %50 = memref.load %arg3[%c1_19, %c3_20] : memref<4x4xf32, #tpu.memory_space<smem>>
    %51 = vector.broadcast %50 : f32 to vector<2x128xf32>
    %52 = arith.mulf %49, %51 : vector<2x128xf32>
    %53 = arith.addf %47, %52 : vector<2x128xf32>
    %c1_21 = arith.constant 1 : index
    %54 = memref.load %arg4[%c1_21] : memref<4xf32, #tpu.memory_space<smem>>
    %55 = vector.broadcast %54 : f32 to vector<2x128xf32>
    %56 = arith.addf %53, %55 : vector<2x128xf32>
    %c0_22 = arith.constant 0 : index
    %c1_23 = arith.constant 1 : index
    %c0_24 = arith.constant 0 : index
    %c0_25 = arith.constant 0 : index
    %57 = vector.load %arg5[%c0_22, %c1_23, %c0_24, %c0_25] : memref<1x4x2x128xf32, #tpu.memory_space<vmem>>, vector<1x1x2x128xf32>
    %58 = vector.shape_cast %57 : vector<1x1x2x128xf32> to vector<2x128xf32>
    %59 = vector.shape_cast %56 : vector<2x128xf32> to vector<1x1x2x128xf32>
    tpu.vector_store %arg5[%c0_22, %c1_23, %c0_24, %c0_25], %59 {strides = array<i32>} : memref<1x4x2x128xf32, #tpu.memory_space<vmem>>, vector<1x1x2x128xf32>,
    %60 = vector.extract_strided_slice %1 {offsets = [0, 0, 0], sizes = [1, 2, 128], strides = [1, 1, 1]} : vector<4x2x128xf32> to vector<1x2x128xf32>
    %61 = vector.shape_cast %60 : vector<1x2x128xf32> to vector<2x128xf32>
    %c2_26 = arith.constant 2 : index
    %c0_27 = arith.constant 0 : index
    %62 = memref.load %arg3[%c2_26, %c0_27] : memref<4x4xf32, #tpu.memory_space<smem>>
    %63 = vector.broadcast %62 : f32 to vector<2x128xf32>
    %64 = arith.mulf %61, %63 : vector<2x128xf32>
    %65 = vector.extract_strided_slice %1 {offsets = [1, 0, 0], sizes = [1, 2, 128], strides = [1, 1, 1]} : vector<4x2x128xf32> to vector<1x2x128xf32>
    %66 = vector.shape_cast %65 : vector<1x2x128xf32> to vector<2x128xf32>
    %c2_28 = arith.constant 2 : index
    %c1_29 = arith.constant 1 : index
    %67 = memref.load %arg3[%c2_28, %c1_29] : memref<4x4xf32, #tpu.memory_space<smem>>
    %68 = vector.broadcast %67 : f32 to vector<2x128xf32>
    %69 = arith.mulf %66, %68 : vector<2x128xf32>
    %70 = arith.addf %64, %69 : vector<2x128xf32>
    %71 = vector.extract_strided_slice %1 {offsets = [2, 0, 0], sizes = [1, 2, 128], strides = [1, 1, 1]} : vector<4x2x128xf32> to vector<1x2x128xf32>
    %72 = vector.shape_cast %71 : vector<1x2x128xf32> to vector<2x128xf32>
    %c2_30 = arith.constant 2 : index
    %c2_31 = arith.constant 2 : index
    %73 = memref.load %arg3[%c2_30, %c2_31] : memref<4x4xf32, #tpu.memory_space<smem>>
    %74 = vector.broadcast %73 : f32 to vector<2x128xf32>
    %75 = arith.mulf %72, %74 : vector<2x128xf32>
    %76 = arith.addf %70, %75 : vector<2x128xf32>
    %77 = vector.extract_strided_slice %1 {offsets = [3, 0, 0], sizes = [1, 2, 128], strides = [1, 1, 1]} : vector<4x2x128xf32> to vector<1x2x128xf32>
    %78 = vector.shape_cast %77 : vector<1x2x128xf32> to vector<2x128xf32>
    %c2_32 = arith.constant 2 : index
    %c3_33 = arith.constant 3 : index
    %79 = memref.load %arg3[%c2_32, %c3_33] : memref<4x4xf32, #tpu.memory_space<smem>>
    %80 = vector.broadcast %79 : f32 to vector<2x128xf32>
    %81 = arith.mulf %78, %80 : vector<2x128xf32>
    %82 = arith.addf %76, %81 : vector<2x128xf32>
    %c2_34 = arith.constant 2 : index
    %83 = memref.load %arg4[%c2_34] : memref<4xf32, #tpu.memory_space<smem>>
    %84 = vector.broadcast %83 : f32 to vector<2x128xf32>
    %85 = arith.addf %82, %84 : vector<2x128xf32>
    %c0_35 = arith.constant 0 : index
    %c2_36 = arith.constant 2 : index
    %c0_37 = arith.constant 0 : index
    %c0_38 = arith.constant 0 : index
    %86 = vector.load %arg5[%c0_35, %c2_36, %c0_37, %c0_38] : memref<1x4x2x128xf32, #tpu.memory_space<vmem>>, vector<1x1x2x128xf32>
    %87 = vector.shape_cast %86 : vector<1x1x2x128xf32> to vector<2x128xf32>
    %88 = vector.shape_cast %85 : vector<2x128xf32> to vector<1x1x2x128xf32>
    tpu.vector_store %arg5[%c0_35, %c2_36, %c0_37, %c0_38], %88 {strides = array<i32>} : memref<1x4x2x128xf32, #tpu.memory_space<vmem>>, vector<1x1x2x128xf32>,
    %89 = vector.extract_strided_slice %1 {offsets = [0, 0, 0], sizes = [1, 2, 128], strides = [1, 1, 1]} : vector<4x2x128xf32> to vector<1x2x128xf32>
    %90 = vector.shape_cast %89 : vector<1x2x128xf32> to vector<2x128xf32>
    %c3_39 = arith.constant 3 : index
    %c0_40 = arith.constant 0 : index
    %91 = memref.load %arg3[%c3_39, %c0_40] : memref<4x4xf32, #tpu.memory_space<smem>>
    %92 = vector.broadcast %91 : f32 to vector<2x128xf32>
    %93 = arith.mulf %90, %92 : vector<2x128xf32>
    %94 = vector.extract_strided_slice %1 {offsets = [1, 0, 0], sizes = [1, 2, 128], strides = [1, 1, 1]} : vector<4x2x128xf32> to vector<1x2x128xf32>
    %95 = vector.shape_cast %94 : vector<1x2x128xf32> to vector<2x128xf32>
    %c3_41 = arith.constant 3 : index
    %c1_42 = arith.constant 1 : index
    %96 = memref.load %arg3[%c3_41, %c1_42] : memref<4x4xf32, #tpu.memory_space<smem>>
    %97 = vector.broadcast %96 : f32 to vector<2x128xf32>
    %98 = arith.mulf %95, %97 : vector<2x128xf32>
    %99 = arith.addf %93, %98 : vector<2x128xf32>
    %100 = vector.extract_strided_slice %1 {offsets = [2, 0, 0], sizes = [1, 2, 128], strides = [1, 1, 1]} : vector<4x2x128xf32> to vector<1x2x128xf32>
    %101 = vector.shape_cast %100 : vector<1x2x128xf32> to vector<2x128xf32>
    %c3_43 = arith.constant 3 : index
    %c2_44 = arith.constant 2 : index
    %102 = memref.load %arg3[%c3_43, %c2_44] : memref<4x4xf32, #tpu.memory_space<smem>>
    %103 = vector.broadcast %102 : f32 to vector<2x128xf32>
    %104 = arith.mulf %101, %103 : vector<2x128xf32>
    %105 = arith.addf %99, %104 : vector<2x128xf32>
    %106 = vector.extract_strided_slice %1 {offsets = [3, 0, 0], sizes = [1, 2, 128], strides = [1, 1, 1]} : vector<4x2x128xf32> to vector<1x2x128xf32>
    %107 = vector.shape_cast %106 : vector<1x2x128xf32> to vector<2x128xf32>
    %c3_45 = arith.constant 3 : index
    %c3_46 = arith.constant 3 : index
    %108 = memref.load %arg3[%c3_45, %c3_46] : memref<4x4xf32, #tpu.memory_space<smem>>
    %109 = vector.broadcast %108 : f32 to vector<2x128xf32>
    %110 = arith.mulf %107, %109 : vector<2x128xf32>
    %111 = arith.addf %105, %110 : vector<2x128xf32>
    %c3_47 = arith.constant 3 : index
    %112 = memref.load %arg4[%c3_47] : memref<4xf32, #tpu.memory_space<smem>>
    %113 = vector.broadcast %112 : f32 to vector<2x128xf32>
    %114 = arith.addf %111, %113 : vector<2x128xf32>
    %c0_48 = arith.constant 0 : index
    %c3_49 = arith.constant 3 : index
    %c0_50 = arith.constant 0 : index
    %c0_51 = arith.constant 0 : index
    %115 = vector.load %arg5[%c0_48, %c3_49, %c0_50, %c0_51] : memref<1x4x2x128xf32, #tpu.memory_space<vmem>>, vector<1x1x2x128xf32>
    %116 = vector.shape_cast %115 : vector<1x1x2x128xf32> to vector<2x128xf32>
    %117 = vector.shape_cast %114 : vector<2x128xf32> to vector<1x1x2x128xf32>
    tpu.vector_store %arg5[%c0_48, %c3_49, %c0_50, %c0_51], %117 {strides = array<i32>} : memref<1x4x2x128xf32, #tpu.memory_space<vmem>>, vector<1x1x2x128xf32>,
    return
  }
  func.func @transform_0(%arg0: i32, %arg1: i32) -> (i32, i32, i32, i32) {
    %c0_i32 = arith.constant 0 : i32
    %c0_i32_0 = arith.constant 0 : i32
    %c0_i32_1 = arith.constant 0 : i32
    return %arg0, %c0_i32, %arg1, %c0_i32_0 : i32, i32, i32, i32
  }
  func.func @transform_1(%arg0: i32, %arg1: i32) -> (i32, i32) {
    %c0_i32 = arith.constant 0 : i32
    %c0_i32_0 = arith.constant 0 : i32
    %c0_i32_1 = arith.constant 0 : i32
    return %c0_i32, %c0_i32_0 : i32, i32
  }
  func.func @transform_2(%arg0: i32, %arg1: i32) -> i32 {
    %c0_i32 = arith.constant 0 : i32
    %c0_i32_0 = arith.constant 0 : i32
    return %c0_i32 : i32
  }
  func.func @transform_3(%arg0: i32, %arg1: i32) -> (i32, i32, i32, i32) {
    %c0_i32 = arith.constant 0 : i32
    %c0_i32_0 = arith.constant 0 : i32
    %c0_i32_1 = arith.constant 0 : i32
    return %arg0, %c0_i32, %arg1, %c0_i32_0 : i32, i32, i32, i32
  }
}

</mosaic_0001>

<llo_original>
// kernel: tpu_custom_call.1
$region0: #{tpu_custom_call.1}
  #allocation0 [shape = 'u32[]', space=smem, size = 0x4, offset = 0x4, fixed_abs, tag = 'smem constant byte address 0x4 - core index']
  #allocation1 [shape = 'u32[72,128]{1,0:T(1,128)}', space=vmem, size = 0x9000, scoped, tag = 'internal scratch']
  %s0 = inlined_call_operand.hbm [shape: f32[2,4,2,128], index: 0, kind: input, shape index: {}]
  %s1 = inlined_call_operand.hbm [shape: f32[4,4], index: 1, kind: input, shape index: {}]
  %s2 = inlined_call_operand.vmem [shape: f32[4], index: 2, kind: input, shape index: {}]
  %s3 = inlined_call_operand.hbm [shape: f32[2,4,2,128], index: 3, kind: output, shape index: {}]
  %s4 = sld [smem:[#allocation0]]
  $region57: #{tpu_custom_call.1} parent=0
    _
  %s6 = ssub.s32 1, %s4
  %s7 = scalar_select 0, %s6, %s4
  $region1: #{tpu_custom_call.1} parent=0
    #allocation2 [shape = 'u8[8192]{0}', space=vmem, size = 0x2000, scoped, tag = 'input window, operand 0']
    #allocation3 [shape = 's32[2]{0}', space=sflag, size = 0x8, scoped, tag = 'scoped memory for tpu_custom_call.1']
    #allocation4 [shape = 's32[2]{0}', space=sflag, size = 0x8, scoped, tag = 'scoped memory for tpu_custom_call.1']
    #allocation5 [shape = 's32[2]{0}', space=sflag, size = 0x8, scoped, tag = 'scoped memory for tpu_custom_call.1']
    #allocation6 [shape = 's32[2]{0}', space=sflag, size = 0x8, scoped, tag = 'scoped memory for tpu_custom_call.1']
    #allocation7 [shape = 'u8[2048]{0}', space=smem, size = 0x800, scoped, tag = 'input window, operand 1, single buffered']
    #allocation8 [shape = 'u8[512]{0}', space=smem, size = 0x200, scoped, tag = 'input window, operand 2, single buffered']
    #allocation9 [shape = 'u8[8192]{0}', space=vmem, size = 0x2000, scoped, tag = 'output window, operand 0']
    %8 = vsyncpa [#allocation3], 0
    %s9 = scalar_lea.sflag [#allocation3], 1
    %10 = vsyncpa %s9, 0
    %11 = vsyncpa [#allocation5], 0
    %12 = vsyncpa [#allocation6], 0
    %13 = vsyncpa [#allocation4], 0
    %s14 = scalar_lea.sflag [#allocation4], 1
    %15 = vsyncpa %s14, 0
    loop: start=0, step=1, limit=4
    $region2: #{tpu_custom_call.1} parent=1 // loop_pre_header
      _
    $region3: #{tpu_custom_call.1} parent=1 // loop_header
      %s17 = sphi 0, %s21
      %p18 = scmp.ge.s32.totalorder %s17, 4
      %s24 = sphi 0, %s36
      %s25 = sphi 0, %s32
      %s26 = sphi 0, %s24
      %s27 = sphi 0, %s25
      %s28 = sphi 0, %s26
      %s29 = sphi 0, %s27
      %s41 = sphi 0, %s43
      %s44 = sphi 0, %s41
      %s45 = sphi 0, %s44
      %s61 = sphi 0, %s45
      %s65 = sphi 0, %s65
      %s67 = sphi 0, %s65
      %s68 = sphi 0, %s67
      %s82 = sphi 0, %s68
      %s86 = sphi 0, %s86
      %s88 = sphi 0, %s86
      %s89 = sphi 0, %s88
      %s103 = sphi 0, %s89
      %s111 = sphi 0, %s113
      %s114 = sphi 0, %s111
      %s115 = sphi 0, %s114
      %s131 = sphi 0, %s115
    $region4: #{tpu_custom_call.1} parent=1 // loop_header_branch
      %20 = sbr.rel (%p18) target = $region8
    $region5: #{tpu_custom_call.1} parent=1 // loop_body
      %s22 = ssub.s32 %s17, 1
      %s23 = ssub.s32 %s17, 2
      %s30 = sadd.s32 1, %s25
      %p31 = scmp.ge.s32.totalorder %s30, 1
      %s32 = scalar_select %p31, 0, %s30
      %s33 = sadd.s32 1, %s24
      %s34 = scalar_select %p31, %s33, %s24
      %p35 = scmp.ge.s32.totalorder %s34, 2
      %s36 = scalar_select %p35, 0, %s34
      %s37 = ssub.s32 %s24, %s36
      %s38 = ssub.s32 %s25, %s32
      %s39 = sor.u32 %s37, %s38
      %p40 = scmp.eq.s32.totalorder %s39, 0
      %s42 = sadd.s32 %s41, 1
      %s43 = scalar_select %p40, %s41, %s42
      %p46 = pneg %p40
      %p47 = scmp.eq.s32.totalorder %s17, 1
      %p48 = por %p46, %p47
      %p49 = scmp.ne.s32.totalorder %s41, %s44
      %p50 = scmp.eq.s32.totalorder %s17, 0
      %p51 = por %p49, %p50
      %p52 = scmp.ne.s32.totalorder %s41, %s44
      %p53 = scmp.eq.s32.totalorder %s22, 1
      %p54 = por %p52, %p53
      %p55 = scmp.ne.s32.totalorder %s44, %s45
      %p56 = scmp.eq.s32.totalorder %s22, 0
      %p57 = por %p55, %p56
      %p58 = scmp.ne.s32.totalorder %s44, %s45
      %p59 = scmp.eq.s32.totalorder %s23, 1
      %p60 = por %p58, %p59
      %p62 = scmp.ne.s32.totalorder %s45, %s61
      %p63 = scmp.eq.s32.totalorder %s23, 0
      %p64 = por %p62, %p63
      %s66 = sadd.s32 %s65, 1
      %p69 = scmp.eq.s32.totalorder %s17, 1
      %p70 = scmp.ne.s32.totalorder %s65, %s67
      %p71 = scmp.eq.s32.totalorder %s17, 0
      %p72 = por %p70, %p71
      %p73 = scmp.ne.s32.totalorder %s65, %s67
      %p74 = scmp.eq.s32.totalorder %s22, 1
      %p75 = por %p73, %p74
      %p76 = scmp.ne.s32.totalorder %s67, %s68
      %p77 = scmp.eq.s32.totalorder %s22, 0
      %p78 = por %p76, %p77
      %p79 = scmp.ne.s32.totalorder %s67, %s68
      %p80 = scmp.eq.s32.totalorder %s23, 1
      %p81 = por %p79, %p80
      %p83 = scmp.ne.s32.totalorder %s68, %s82
      %p84 = scmp.eq.s32.totalorder %s23, 0
      %p85 = por %p83, %p84
      %s87 = sadd.s32 %s86, 1
      %p90 = scmp.eq.s32.totalorder %s17, 1
      %p91 = scmp.ne.s32.totalorder %s86, %s88
      %p92 = scmp.eq.s32.totalorder %s17, 0
      %p93 = por %p91, %p92
      %p94 = scmp.ne.s32.totalorder %s86, %s88
      %p95 = scmp.eq.s32.totalorder %s22, 1
      %p96 = por %p94, %p95
      %p97 = scmp.ne.s32.totalorder %s88, %s89
      %p98 = scmp.eq.s32.totalorder %s22, 0
      %p99 = por %p97, %p98
      %p100 = scmp.ne.s32.totalorder %s88, %s89
      %p101 = scmp.eq.s32.totalorder %s23, 1
      %p102 = por %p100, %p101
      %p104 = scmp.ne.s32.totalorder %s89, %s103
      %p105 = scmp.eq.s32.totalorder %s23, 0
      %p106 = por %p104, %p105
      %s107 = ssub.s32 %s24, %s36
      %s108 = ssub.s32 %s25, %s32
      %s109 = sor.u32 %s107, %s108
      %p110 = scmp.eq.s32.totalorder %s109, 0
      %s112 = sadd.s32 %s111, 1
      %s113 = scalar_select %p110, %s111, %s112
      %p116 = pneg %p110
      %p117 = scmp.eq.s32.totalorder %s17, 1
      %p118 = por %p116, %p117
      %p119 = scmp.ne.s32.totalorder %s111, %s114
      %p120 = scmp.eq.s32.totalorder %s17, 0
      %p121 = por %p119, %p120
      %p122 = scmp.ne.s32.totalorder %s111, %s114
      %p123 = scmp.eq.s32.totalorder %s22, 1
      %p124 = por %p122, %p123
      %p125 = scmp.ne.s32.totalorder %s114, %s115
      %p126 = scmp.eq.s32.totalorder %s22, 0
      %p127 = por %p125, %p126
      %p128 = scmp.ne.s32.totalorder %s114, %s115
      %p129 = scmp.eq.s32.totalorder %s23, 1
      %p130 = por %p128, %p129
      %p132 = scmp.ne.s32.totalorder %s115, %s131
      %p133 = scmp.eq.s32.totalorder %s23, 0
      %p134 = por %p132, %p133
      %p135 = scmp.le.s32.totalorder 1, %s17
      %p136 = scmp.lt.s32.totalorder %s17, 3
      %p137 = pnand %p135, %p136
      %p138 = pneg %p137
      // Predicated region
      $region9: #{tpu_custom_call.1} parent=5 // pred_check
        _
      $region10: #{tpu_custom_call.1} parent=5 // pred_check_branch
        %140 = sbr.rel (%p137) target = $region12
      $region11: #{tpu_custom_call.1} parent=5 // pred_region
        %s141 = ssub.s32 %s17, 1
        // Predicated region
        $region13: #{tpu_custom_call.1} parent=11 // pred_check
          %p142 = pneg %p78
        $region14: #{tpu_custom_call.1} parent=11 // pred_check_branch
          %144 = sbr.rel (%p142) target = $region16
        $region15: #{tpu_custom_call.1} parent=11 // pred_region
          %146 = vsyncadd [#allocation5], 0
          %s148 = sshll.u32 %s1, 4
          %s149 = int_to_ptr.hbm [resolvable:$true] %s148
          %151 = dma.hbm_to_smem %s149, 64, [#allocation7], [#allocation5]
        $region16: #{tpu_custom_call.1} parent=11 // pred_fallthru
          _
        // Predicated region
        $region17: #{tpu_custom_call.1} parent=11 // pred_check
          %p152 = pneg %p99
        $region18: #{tpu_custom_call.1} parent=11 // pred_check_branch
          %154 = sbr.rel (%p152) target = $region20
        $region19: #{tpu_custom_call.1} parent=11 // pred_region
          %156 = vsyncadd [#allocation6], 0
          %s158 = sshll.u32 %s2, 4
          %s159 = int_to_ptr.vmem [resolvable:$true] %s158
          %161 = dma.vmem_to_smem %s159, 16, [#allocation8], [#allocation6]
        $region20: #{tpu_custom_call.1} parent=11 // pred_fallthru
          _
      $region12: #{tpu_custom_call.1} parent=5 // pred_fallthru
        _
      %p162 = scmp.lt.s32.totalorder %s17, 2
      // Predicated region
      $region21: #{tpu_custom_call.1} parent=5 // pred_check
        %p163 = pneg %p162
      $region22: #{tpu_custom_call.1} parent=5 // pred_check_branch
        %165 = sbr.rel (%p163) target = $region24
      $region23: #{tpu_custom_call.1} parent=5 // pred_region
        // Predicated region
        $region25: #{tpu_custom_call.1} parent=23 // pred_check
          %p166 = pneg %p51
        $region26: #{tpu_custom_call.1} parent=23 // pred_check_branch
          %168 = sbr.rel (%p166) target = $region28
        $region27: #{tpu_custom_call.1} parent=23 // pred_region
          %s169 = sand.u32 %s41, 1
          %s170 = scalar_lea.sflag [#allocation3], %s169
          %s171 = sand.u32 %s41, 1
          %s172 = smul.addr %s171, 8
          %s173 = scalar_lea.vmem [#allocation2], %s172
          %175 = vsyncadd %s170, 0
          %s176 = smul.addr %s24, 4
          %s177 = sadd.s32 %s25, %s176
          %s178 = smul.addr %s177, 2
          %s179 = scalar_lea.hbm %s0, %s178
          %s180 = sshll.u32 %s179, 4
          %s181 = int_to_ptr.hbm [resolvable:$true] %s180
          %s182 = sshll.u32 %s173, 4
          %s183 = int_to_ptr.vmem [resolvable:$true] %s182
          %188 = dma.hbm_to_vmem [thread:$0]  %s181, 128, %s183, %s170, 32, 32, 2
        $region28: #{tpu_custom_call.1} parent=23 // pred_fallthru
          _
      $region24: #{tpu_custom_call.1} parent=5 // pred_fallthru
        _
      %p189 = scmp.le.s32.totalorder 1, %s17
      %p190 = scmp.lt.s32.totalorder %s17, 3
      %p191 = pnand %p189, %p190
      %p192 = pneg %p191
      // Predicated region
      $region29: #{tpu_custom_call.1} parent=5 // pred_check
        _
      $region30: #{tpu_custom_call.1} parent=5 // pred_check_branch
        %194 = sbr.rel (%p191) target = $region32
      $region31: #{tpu_custom_call.1} parent=5 // pred_region
        %s195 = ssub.s32 %s17, 1
        %s196 = sand.u32 %s44, 1
        %s197 = scalar_lea.sflag [#allocation3], %s196
        %s198 = sand.u32 %s44, 1
        %s199 = smul.addr %s198, 8
        %s200 = scalar_lea.vmem [#allocation2], %s199
        // Predicated region
        $region33: #{tpu_custom_call.1} parent=31 // pred_check
          %p201 = pneg %p57
        $region34: #{tpu_custom_call.1} parent=31 // pred_check_branch
          %203 = sbr.rel (%p201) target = $region36
        $region35: #{tpu_custom_call.1} parent=31 // pred_region
          %205 = dma.done %s197, 128
        $region36: #{tpu_custom_call.1} parent=31 // pred_fallthru
          _
        // Predicated region
        $region37: #{tpu_custom_call.1} parent=31 // pred_check
          %p206 = pneg %p78
        $region38: #{tpu_custom_call.1} parent=31 // pred_check_branch
          %208 = sbr.rel (%p206) target = $region40
        $region39: #{tpu_custom_call.1} parent=31 // pred_region
          %210 = dma.done [#allocation5], 64
        $region40: #{tpu_custom_call.1} parent=31 // pred_fallthru
          _
        // Predicated region
        $region41: #{tpu_custom_call.1} parent=31 // pred_check
          %p211 = pneg %p99
        $region42: #{tpu_custom_call.1} parent=31 // pred_check_branch
          %213 = sbr.rel (%p211) target = $region44
        $region43: #{tpu_custom_call.1} parent=31 // pred_region
          %215 = dma.done [#allocation6], 16
        $region44: #{tpu_custom_call.1} parent=31 // pred_fallthru
          _
        %216 = sfence
        %s217 = sand.u32 %s44, 1
        %s218 = scalar_lea.sflag [#allocation3], %s217
        %s219 = sand.u32 %s44, 1
        %s220 = smul.addr %s219, 8
        %s221 = scalar_lea.vmem [#allocation2], %s220
        %p222 = pneg %p57
        %p223 = pneg %p54
        %p224 = pneg %p78
        %p225 = pneg %p75
        %p226 = pneg %p99
        %p227 = pneg %p96
        %p228 = pneg %p127
        %p229 = pneg %p124
        %s230 = sand.u32 %s114, 1
        %s231 = scalar_lea.sflag [#allocation4], %s230
        %s232 = sand.u32 %s114, 1
        %s233 = smul.addr %s232, 8
        %s234 = scalar_lea.vmem [#allocation9], %s233
        %v235 = vld [vmem:[%s200] sm:$0x3]
        %v236 = vld [vmem:[%s200 + $0x2] sm:$0x3]
        %v237 = vld [vmem:[%s200 + $0x4] sm:$0x3]
        %v238 = vld [vmem:[%s200 + $0x6] sm:$0x3]
        %s239 = sld [smem:[#allocation7]]
        %v240 = vstv %s239
        %v241 = vmul.f32 %v235, %v240
        %s242 = sld [smem:[#allocation7 + $0x1]]
        %v243 = vstv %s242
        %v244 = vmul.f32 %v236, %v243
        %v245 = vadd.f32 %v241, %v244
        %s246 = sld [smem:[#allocation7 + $0x2]]
        %v247 = vstv %s246
        %v248 = vmul.f32 %v237, %v247
        %v249 = vadd.f32 %v245, %v248
        %s250 = sld [smem:[#allocation7 + $0x3]]
        %v251 = vstv %s250
        %v252 = vmul.f32 %v238, %v251
        %v253 = vadd.f32 %v249, %v252
        %s254 = sld [smem:[#allocation8]]
        %v255 = vstv %s254
        %v256 = vadd.f32 %v253, %v255
        %257 = vst [vmem:[%s234] sm:$0x3] %v256
        %s258 = sld [smem:[#allocation7 + $0x80]]
        %v259 = vstv %s258
        %v260 = vmul.f32 %v235, %v259
        %s261 = sld [smem:[#allocation7 + $0x81]]
        %v262 = vstv %s261
        %v263 = vmul.f32 %v236, %v262
        %v264 = vadd.f32 %v260, %v263
        %s265 = sld [smem:[#allocation7 + $0x82]]
        %v266 = vstv %s265
        %v267 = vmul.f32 %v237, %v266
        %v268 = vadd.f32 %v264, %v267
        %s269 = sld [smem:[#allocation7 + $0x83]]
        %v270 = vstv %s269
        %v271 = vmul.f32 %v238, %v270
        %v272 = vadd.f32 %v268, %v271
        %s273 = sld [smem:[#allocation8 + $0x1]]
        %v274 = vstv %s273
        %v275 = vadd.f32 %v272, %v274
        %s276 = scalar_lea.vmem %s234, 2 [#allocation9]
        %277 = vst [vmem:[%s276] sm:$0x3] %v275
        %s278 = sld [smem:[#allocation7 + $0x100]]
        %v279 = vstv %s278
        %v280 = vmul.f32 %v235, %v279
        %s281 = sld [smem:[#allocation7 + $0x101]]
        %v282 = vstv %s281
        %v283 = vmul.f32 %v236, %v282
        %v284 = vadd.f32 %v280, %v283
        %s285 = sld [smem:[#allocation7 + $0x102]]
        %v286 = vstv %s285
        %v287 = vmul.f32 %v237, %v286
        %v288 = vadd.f32 %v284, %v287
        %s289 = sld [smem:[#allocation7 + $0x103]]
        %v290 = vstv %s289
        %v291 = vmul.f32 %v238, %v290
        %v292 = vadd.f32 %v288, %v291
        %s293 = sld [smem:[#allocation8 + $0x2]]
        %v294 = vstv %s293
        %v295 = vadd.f32 %v292, %v294
        %s296 = scalar_lea.vmem %s234, 4 [#allocation9]
        %297 = vst [vmem:[%s296] sm:$0x3] %v295
        %s298 = sld [smem:[#allocation7 + $0x180]]
        %v299 = vstv %s298
        %v300 = vmul.f32 %v235, %v299
        %s301 = sld [smem:[#allocation7 + $0x181]]
        %v302 = vstv %s301
        %v303 = vmul.f32 %v236, %v302
        %v304 = vadd.f32 %v300, %v303
        %s305 = sld [smem:[#allocation7 + $0x182]]
        %v306 = vstv %s305
        %v307 = vmul.f32 %v237, %v306
        %v308 = vadd.f32 %v304, %v307
        %s309 = sld [smem:[#allocation7 + $0x183]]
        %v310 = vstv %s309
        %v311 = vmul.f32 %v238, %v310
        %v312 = vadd.f32 %v308, %v311
        %s313 = sld [smem:[#allocation8 + $0x3]]
        %v314 = vstv %s313
        %v315 = vadd.f32 %v312, %v314
        %s316 = scalar_lea.vmem %s234, 6 [#allocation9]
        %317 = vst [vmem:[%s316] sm:$0x3] %v315
        %s318 = sand.u32 %s114, 1
        %s319 = scalar_lea.sflag [#allocation4], %s318
        %s320 = sand.u32 %s114, 1
        %s321 = smul.addr %s320, 8
        %s322 = scalar_lea.vmem [#allocation9], %s321
        // Predicated region
        $region45: #{tpu_custom_call.1} parent=31 // pred_check
          %p323 = pneg %p124
        $region46: #{tpu_custom_call.1} parent=31 // pred_check_branch
          %325 = sbr.rel (%p323) target = $region48
        $region47: #{tpu_custom_call.1} parent=31 // pred_region
          %327 = vsyncadd %s319, 0
          %s328 = smul.addr %s26, 4
          %s329 = sadd.s32 %s27, %s328
          %s330 = smul.addr %s329, 2
          %s331 = scalar_lea.hbm %s3, %s330
          %s332 = sshll.u32 %s322, 4
          %s333 = int_to_ptr.vmem [resolvable:$true] %s332
          %s334 = sshll.u32 %s331, 4
          %s335 = int_to_ptr.hbm [resolvable:$true] %s334
          %340 = dma.vmem_to_hbm [thread:$0]  %s333, 128, %s335, %s319, 32, 32, 2
        $region48: #{tpu_custom_call.1} parent=31 // pred_fallthru
          _
      $region32: #{tpu_custom_call.1} parent=5 // pred_fallthru
        _
      %p341 = scmp.le.s32.totalorder 2, %s17
      // Predicated region
      $region49: #{tpu_custom_call.1} parent=5 // pred_check
        %p342 = pneg %p341
      $region50: #{tpu_custom_call.1} parent=5 // pred_check_branch
        %344 = sbr.rel (%p342) target = $region52
      $region51: #{tpu_custom_call.1} parent=5 // pred_region
        %s345 = ssub.s32 %s17, 2
        // Predicated region
        $region53: #{tpu_custom_call.1} parent=51 // pred_check
          %p346 = pneg %p130
        $region54: #{tpu_custom_call.1} parent=51 // pred_check_branch
          %348 = sbr.rel (%p346) target = $region56
        $region55: #{tpu_custom_call.1} parent=51 // pred_region
          %s349 = sand.u32 %s115, 1
          %s350 = scalar_lea.sflag [#allocation4], %s349
          %s351 = sand.u32 %s115, 1
          %s352 = smul.addr %s351, 8
          %s353 = scalar_lea.vmem [#allocation9], %s352
          %355 = dma.done %s350, 128
        $region56: #{tpu_custom_call.1} parent=51 // pred_fallthru
          _
      $region52: #{tpu_custom_call.1} parent=5 // pred_fallthru
        _
    $region6: #{tpu_custom_call.1} parent=1 // loop_footer
      %s21 = sadd.s32 1, %s17
    $region7: #{tpu_custom_call.1} parent=1 // loop_footer_branch
      %16 = sbr.rel target = $region3
    $region8: #{tpu_custom_call.1} parent=1 // loop_exit
      _
    %356 = vsyncpa [#allocation3], 1
    %s357 = scalar_lea.sflag [#allocation3], 1
    %358 = vsyncpa %s357, 1
    %359 = vsyncpa [#allocation4], 1
    %s360 = scalar_lea.sflag [#allocation4], 1
    %361 = vsyncpa %s360, 1
    %362 = vsyncpa [#allocation5], 1
    %s363 = scalar_lea.sflag [#allocation5], 1
    %364 = vsyncpa %s363, 1
    %365 = vsyncpa [#allocation6], 1
    %s366 = scalar_lea.sflag [#allocation6], 1
    %367 = vsyncpa %s366, 1

</llo_original>
